<compile_context>
chip_gen: v5e
topology: v5e:2x2
jax: 0.10.0
libtpu: 0.0.40
codegen_flags: <defaults>
</compile_context>

<pallas_src>
import jax
import jax.numpy as jnp
import numpy as np
from jax.experimental import pallas as pl
from jax.experimental.pallas import tpu as pltpu


def _round_up(n, m):
    return ((n + m - 1) // m) * m


def _pick_tile(n, candidates):
    for t in candidates:
        if n % t == 0:
            return t
    return n  # small / awkward n: a single full-extent tile


# --------------------------------------------------------------------------
# Stage 1: fused Q/K/V projection (runs once over all B*T rows).
# --------------------------------------------------------------------------
def _proj_kernel(x_ref, w_ref, b_ref, q_ref, k_ref, v_ref):
    d_pad = q_ref.shape[-1]
    # bf16 MXU matmul, f32 accumulation; softmax scale + bias already folded
    # into w_ref / b_ref for the Q columns.
    y = jnp.dot(x_ref[...].astype(jnp.bfloat16), w_ref[...],
                preferred_element_type=jnp.float32) + b_ref[...]
    y = y.astype(jnp.bfloat16)
    # Lane-aligned (multiple-of-128) splits -> lane-dense stores.
    q_ref[...] = y[:, :d_pad]
    k_ref[...] = y[:, d_pad:2 * d_pad]
    v_ref[...] = y[:, 2 * d_pad:]


# --------------------------------------------------------------------------
# Stage 2: flash attention over precomputed bf16 Q/K/V.
# --------------------------------------------------------------------------
def _flash_kernel(q_ref, k_ref, v_ref, mask_ref, o_ref, m_sc, l_sc, acc_sc):
    ki = pl.program_id(2)

    @pl.when(ki == 0)
    def _init():
        m_sc[...] = jnp.full_like(m_sc, -jnp.inf)
        l_sc[...] = jnp.zeros_like(l_sc)
        acc_sc[...] = jnp.zeros_like(acc_sc)

    # Scores: batched NT matmul on the MXU (contraction dim = d_pad >= 128).
    s = jnp.einsum('bqd,bkd->bqk', q_ref[...], k_ref[...],
                   preferred_element_type=jnp.float32)
    # masked_fill(mask == 0, -inf) as an additive bias with a large finite
    # sentinel (avoids NaNs in the online-softmax rescale path).
    s = s + (mask_ref[...].astype(jnp.float32) - 1.0) * jnp.float32(1e30)

    # Online softmax; all softmax math in f32 (v5e-friendly).
    m_new = jnp.maximum(m_sc[...], jnp.max(s, axis=-1, keepdims=True))
    alpha = jnp.exp(m_sc[...] - m_new)
    p = jnp.exp(s - m_new)
    l_sc[...] = alpha * l_sc[...] + jnp.sum(p, axis=-1, keepdims=True)
    acc_sc[...] = alpha * acc_sc[...] + jnp.einsum(
        'bqk,bkd->bqd', p.astype(jnp.bfloat16), v_ref[...],
        preferred_element_type=jnp.float32)
    m_sc[...] = m_new

    @pl.when(ki == pl.num_programs(2) - 1)
    def _finalize():
        # Lane-dense (multiple-of-128 lanes) output store.
        o_ref[...] = (acc_sc[...] * pl.reciprocal(l_sc[...], approx=True)
                      ).astype(o_ref.dtype)


def attention(x, mask, wq, bq, wk, bk, wv, bv, *, tq=None, tk=None):
    """x: (B, T, d_model); mask broadcastable to (B, T, T), nonzero = keep."""
    B, T, D = x.shape
    d = wq.shape[1]
    d_pad = _round_up(max(d, 1), 128)           # lane-dense head dimension

    # Fold 1/sqrt(d) into the Q projection; zero-pad all weights/biases to d_pad.
    scale = float(d) ** -0.5

    def pad_w(w, s=1.0):
        return (jnp.zeros((D, d_pad), jnp.float32).at[:, :d].set(w * s)
                ).astype(jnp.bfloat16)

    def pad_b(b, s=1.0):
        return jnp.zeros((1, d_pad), jnp.float32).at[0, :d].set(b * s)

    w3 = jnp.concatenate([pad_w(wq, scale), pad_w(wk), pad_w(wv)], axis=1)
    b3 = jnp.concatenate([pad_b(bq, scale), pad_b(bk), pad_b(bv)], axis=1)

    # ---------------- projection pass: (B*T, D) @ (D, 3*d_pad) ----------------
    n_rows = B * T
    x2d = x.reshape(n_rows, D)
    rt = _pick_tile(n_rows, (1024, 512, 256, 128))

    q, k, v = pl.pallas_call(
        _proj_kernel,
        out_shape=[jax.ShapeDtypeStruct((n_rows, d_pad), jnp.bfloat16)] * 3,
        grid_spec=pltpu.PrefetchScalarGridSpec(
            num_scalar_prefetch=0,
            grid=(n_rows // rt,),
            in_specs=[
                pl.BlockSpec((rt, D), lambda i: (i, 0)),
                pl.BlockSpec((D, 3 * d_pad), lambda i: (0, 0)),
                pl.BlockSpec((1, 3 * d_pad), lambda i: (0, 0)),
            ],
            out_specs=[pl.BlockSpec((rt, d_pad), lambda i: (i, 0))] * 3,
        ),
        compiler_params=pltpu.CompilerParams(
            dimension_semantics=("parallel",)),
    )(x2d, w3, b3)
    q = q.reshape(B, T, d_pad)
    k = k.reshape(B, T, d_pad)
    v = v.reshape(B, T, d_pad)

    # Stream the mask as int8 0/1 (4x less HBM traffic than f32).
    mask_i8 = (jnp.broadcast_to(mask, (B, T, T)) != 0).astype(jnp.int8)
    # TODO(synk): for causal masks, generate the mask in-kernel via iota and
    # skip fully-masked kv tiles instead of streaming it from HBM.

    # ---------------- flash pass ----------------
    # Large tiles amortize per-grid-step overhead; 256/512 also match the
    # 256-wide MXU on v6e/v7x. For tiny T, fold batch elements into one block.
    if tq is None:
        tq = _pick_tile(T, (512, 256, 128))
    if tk is None:
        tk = _pick_tile(T, (512, 256, 128))
    assert T % tq == 0 and T % tk == 0, "T must be divisible by the tile sizes"
    nq, nk = T // tq, T // tk

    if T >= 128:
        bB = 1
    else:
        target = max(1, 128 // T)
        bB = 1
        for c in range(min(B, target), 0, -1):
            if B % c == 0:
                bB = c
                break

    out = pl.pallas_call(
        _flash_kernel,
        out_shape=jax.ShapeDtypeStruct((B, T, d_pad), x.dtype),
        grid_spec=pltpu.PrefetchScalarGridSpec(
            num_scalar_prefetch=0,
            grid=(B // bB, nq, nk),
            in_specs=[
                pl.BlockSpec((bB, tq, d_pad), lambda b, qi, ki: (b, qi, 0)),  # Q
                pl.BlockSpec((bB, tk, d_pad), lambda b, qi, ki: (b, ki, 0)),  # K
                pl.BlockSpec((bB, tk, d_pad), lambda b, qi, ki: (b, ki, 0)),  # V
                pl.BlockSpec((bB, tq, tk), lambda b, qi, ki: (b, qi, ki)),    # mask
            ],
            out_specs=pl.BlockSpec((bB, tq, d_pad), lambda b, qi, ki: (b, qi, 0)),
            scratch_shapes=[
                pltpu.VMEM((bB, tq, 1), jnp.float32),      # running row max
                pltpu.VMEM((bB, tq, 1), jnp.float32),      # running row sum
                pltpu.VMEM((bB, tq, d_pad), jnp.float32),  # output accumulator
            ],
        ),
        compiler_params=pltpu.CompilerParams(
            dimension_semantics=("parallel", "parallel", "arbitrary"),
            # Conservative limit: fits v7x's 64 MiB physical VMEM; tiles above
            # use well under 2 MiB per step so pipelining depth is unaffected.
            vmem_limit_bytes=32 * 1024 * 1024,
        ),
    )(q, k, v, mask_i8)

    # Drop the zero-padded head columns.
    return out[..., :d]


def _reference(x, mask, wq, bq, wk, bk, wv, bv):
    q = x @ wq + bq
    k = x @ wk + bk
    v = x @ wv + bv
    w = (q @ jnp.swapaxes(k, -2, -1)) * (k.shape[-1] ** -0.5)
    w = jnp.where(mask == 0, -jnp.inf, w)
    w = jax.nn.softmax(w, axis=-1)
    return w @ v


if __name__ == "__main__":
    B, T, d_model, d = 2, 8, 32, 16
    key = jax.random.PRNGKey(0)
    kx, kq, kbq, kk, kbk, kv, kbv = jax.random.split(key, 7)

    x = jax.random.normal(kx, (B, T, d_model), dtype=jnp.float32)

    # Deterministic nn.Linear-style init: uniform(-1/sqrt(d_model), 1/sqrt(d_model)).
    bound = 1.0 / np.sqrt(d_model)
    wq = jax.random.uniform(kq, (d_model, d), jnp.float32, -bound, bound)
    bq = jax.random.uniform(kbq, (d,), jnp.float32, -bound, bound)
    wk = jax.random.uniform(kk, (d_model, d), jnp.float32, -bound, bound)
    bk = jax.random.uniform(kbk, (d,), jnp.float32, -bound, bound)
    wv = jax.random.uniform(kv, (d_model, d), jnp.float32, -bound, bound)
    bv = jax.random.uniform(kbv, (d,), jnp.float32, -bound, bound)

    # Causal mask, broadcast to (B, T, T): 1 = attend, 0 = masked.
    causal = jnp.tril(jnp.ones((T, T), dtype=jnp.float32))
    mask = jnp.broadcast_to(causal, (B, T, T))

    out = attention(x, mask, wq, bq, wk, bk, wv, bv)
    out = jax.block_until_ready(out)

    ref = _reference(x, mask, wq, bq, wk, bk, wv, bv)
    # bf16 MXU operands (f32 accumulation) + approx reciprocal -> bf16-level tolerance.
    np.testing.assert_allclose(np.asarray(out), np.asarray(ref), rtol=2e-2, atol=2e-2)

    print("KERNEL_OK")
</pallas_src>

<mosaic_0001>
module attributes {stable_mosaic.version = 11 : i64} {
  func.func @_proj_kernel(%arg0: i32, %arg1: memref<16x32xf32, #tpu.memory_space<vmem>>, %arg2: memref<32x384xbf16, #tpu.memory_space<vmem>>, %arg3: memref<1x384xf32, #tpu.memory_space<vmem>>, %arg4: memref<16x128xbf16, #tpu.memory_space<vmem>>, %arg5: memref<16x128xbf16, #tpu.memory_space<vmem>>, %arg6: memref<16x128xbf16, #tpu.memory_space<vmem>>) attributes {dimension_semantics = [#tpu.dimension_semantics<parallel>], iteration_bounds = array<i64: 1>, scalar_prefetch = 0 : i64, scratch_operands = 0 : i64, tpu.core_type = #tpu.core_type<tc>, window_params = [{transform_indices = @transform_0, window_bounds = array<i64: 16, 32>}, {pipeline_mode = #tpu.pipeline_mode<synchronous>, transform_indices = @transform_1, window_bounds = array<i64: 32, 384>}, {pipeline_mode = #tpu.pipeline_mode<synchronous>, transform_indices = @transform_2, window_bounds = array<i64: 1, 384>}, {transform_indices = @transform_3, window_bounds = array<i64: 16, 128>}, {transform_indices = @transform_4, window_bounds = array<i64: 16, 128>}, {transform_indices = @transform_5, window_bounds = array<i64: 16, 128>}]} {
    %c0 = arith.constant 0 : index
    %c0_0 = arith.constant 0 : index
    %0 = vector.load %arg1[%c0, %c0_0] : memref<16x32xf32, #tpu.memory_space<vmem>>, vector<16x32xf32>
    %1 = arith.truncf %0 : vector<16x32xf32> to vector<16x32xbf16>
    %c0_1 = arith.constant 0 : index
    %c0_2 = arith.constant 0 : index
    %2 = vector.load %arg2[%c0_1, %c0_2] : memref<32x384xbf16, #tpu.memory_space<vmem>>, vector<32x384xbf16>
    %cst = arith.constant dense<0.000000e+00> : vector<16x384xf32>
    %3 = tpu.matmul %1, %2, %cst {dimension_numbers = #tpu.dot_dimension_numbers<[1], [0], [0], [1], [0, 0, 1, 1], [], []>} : vector<16x32xbf16>, vector<32x384xbf16>, vector<16x384xf32> -> vector<16x384xf32>
    %c0_3 = arith.constant 0 : index
    %c0_4 = arith.constant 0 : index
    %4 = vector.load %arg3[%c0_3, %c0_4] : memref<1x384xf32, #tpu.memory_space<vmem>>, vector<1x384xf32>
    %5 = vector.broadcast %4 : vector<1x384xf32> to vector<16x384xf32>
    %6 = arith.addf %3, %5 : vector<16x384xf32>
    %7 = arith.truncf %6 : vector<16x384xf32> to vector<16x384xbf16>
    %8 = vector.extract_strided_slice %7 {offsets = [0, 0], sizes = [16, 128], strides = [1, 1]} : vector<16x384xbf16> to vector<16x128xbf16>
    %c0_5 = arith.constant 0 : index
    %c0_6 = arith.constant 0 : index
    %9 = vector.load %arg4[%c0_5, %c0_6] : memref<16x128xbf16, #tpu.memory_space<vmem>>, vector<16x128xbf16>
    tpu.vector_store %arg4[%c0_5, %c0_6], %8 {strides = array<i32>} : memref<16x128xbf16, #tpu.memory_space<vmem>>, vector<16x128xbf16>,
    %10 = vector.extract_strided_slice %7 {offsets = [0, 128], sizes = [16, 128], strides = [1, 1]} : vector<16x384xbf16> to vector<16x128xbf16>
    %c0_7 = arith.constant 0 : index
    %c0_8 = arith.constant 0 : index
    %11 = vector.load %arg5[%c0_7, %c0_8] : memref<16x128xbf16, #tpu.memory_space<vmem>>, vector<16x128xbf16>
    tpu.vector_store %arg5[%c0_7, %c0_8], %10 {strides = array<i32>} : memref<16x128xbf16, #tpu.memory_space<vmem>>, vector<16x128xbf16>,
    %12 = vector.extract_strided_slice %7 {offsets = [0, 256], sizes = [16, 128], strides = [1, 1]} : vector<16x384xbf16> to vector<16x128xbf16>
    %c0_9 = arith.constant 0 : index
    %c0_10 = arith.constant 0 : index
    %13 = vector.load %arg6[%c0_9, %c0_10] : memref<16x128xbf16, #tpu.memory_space<vmem>>, vector<16x128xbf16>
    tpu.vector_store %arg6[%c0_9, %c0_10], %12 {strides = array<i32>} : memref<16x128xbf16, #tpu.memory_space<vmem>>, vector<16x128xbf16>,
    return
  }
  func.func @transform_0(%arg0: i32) -> (i32, i32) {
    %c0_i32 = arith.constant 0 : i32
    %c0_i32_0 = arith.constant 0 : i32
    return %arg0, %c0_i32 : i32, i32
  }
  func.func @transform_1(%arg0: i32) -> (i32, i32) {
    %c0_i32 = arith.constant 0 : i32
    %c0_i32_0 = arith.constant 0 : i32
    %c0_i32_1 = arith.constant 0 : i32
    return %c0_i32, %c0_i32_0 : i32, i32
  }
  func.func @transform_2(%arg0: i32) -> (i32, i32) {
    %c0_i32 = arith.constant 0 : i32
    %c0_i32_0 = arith.constant 0 : i32
    %c0_i32_1 = arith.constant 0 : i32
    return %c0_i32, %c0_i32_0 : i32, i32
  }
  func.func @transform_3(%arg0: i32) -> (i32, i32) {
    %c0_i32 = arith.constant 0 : i32
    %c0_i32_0 = arith.constant 0 : i32
    return %arg0, %c0_i32 : i32, i32
  }
  func.func @transform_4(%arg0: i32) -> (i32, i32) {
    %c0_i32 = arith.constant 0 : i32
    %c0_i32_0 = arith.constant 0 : i32
    return %arg0, %c0_i32 : i32, i32
  }
  func.func @transform_5(%arg0: i32) -> (i32, i32) {
    %c0_i32 = arith.constant 0 : i32
    %c0_i32_0 = arith.constant 0 : i32
    return %arg0, %c0_i32 : i32, i32
  }
}

</mosaic_0001>

<llo_original>
// kernel: tpu_custom_call.1
$region0: #{tpu_custom_call.1}
  #allocation0 [shape = 'u32[]', space=smem, size = 0x4, offset = 0x4, fixed_abs, tag = 'smem constant byte address 0x4 - core index']
  #allocation1 [shape = 'u32[72,128]{1,0:T(1,128)}', space=vmem, size = 0x9000, scoped, tag = 'internal scratch']
  %s0 = inlined_call_operand.hbm [shape: f32[16,32], index: 0, kind: input, shape index: {}]
  %s1 = inlined_call_operand.hbm [shape: bf16[32,384], index: 1, kind: input, shape index: {}]
  %s2 = inlined_call_operand.hbm [shape: f32[1,384], index: 2, kind: input, shape index: {}]
  %s3 = inlined_call_operand.hbm [shape: bf16[16,128], index: 3, kind: output, shape index: {0}]
  %s4 = inlined_call_operand.hbm [shape: bf16[16,128], index: 4, kind: output, shape index: {1}]
  %s5 = inlined_call_operand.hbm [shape: bf16[16,128], index: 5, kind: output, shape index: {2}]
  %6 = xla_tuple %s3, %s4, %s5
  %s7 = sld [smem:[#allocation0]]
  $region50: #{tpu_custom_call.1} parent=0
    _
  %s9 = ssub.s32 1, %s7
  %s10 = scalar_select 0, %s9, %s7
  $region1: #{tpu_custom_call.1} parent=0
    #allocation2 [shape = 'u8[8192]{0}', space=vmem, size = 0x2000, scoped, tag = 'input window, operand 0, single buffered']
    #allocation3 [shape = 's32[1]{0}', space=sflag, size = 0x4, scoped, tag = 'scoped memory for tpu_custom_call.1']
    #allocation4 [shape = 's32[1]{0}', space=sflag, size = 0x4, scoped, tag = 'scoped memory for tpu_custom_call.1']
    #allocation5 [shape = 'u8[24576]{0}', space=vmem, size = 0x6000, scoped, tag = 'input window, operand 1, single buffered']
    #allocation6 [shape = 's32[1]{0}', space=sflag, size = 0x4, scoped, tag = 'scoped memory for tpu_custom_call.1']
    #allocation7 [shape = 'u8[1536]{0}', space=vmem, size = 0x800, scoped, tag = 'input window, operand 2, single buffered']
    #allocation8 [shape = 'u8[4096]{0}', space=vmem, size = 0x1000, scoped, tag = 'output window, operand 0, single buffered']
    #allocation9 [shape = 'u8[4096]{0}', space=vmem, size = 0x1000, scoped, tag = 'output window, operand 1, single buffered']
    #allocation10 [shape = 's32[1]{0}', space=sflag, size = 0x4, scoped, tag = 'scoped memory for tpu_custom_call.1']
    #allocation11 [shape = 'u8[4096]{0}', space=vmem, size = 0x1000, scoped, tag = 'output window, operand 2, single buffered']
    %11 = vsyncpa [#allocation3], 0
    %12 = vsyncpa [#allocation6], 0
    %13 = vsyncpa [#allocation4], 0
    %14 = vsyncpa [#allocation10], 0
    // Predicated region
    $region2: #{tpu_custom_call.1} parent=1 // pred_check
      _
    $region3: #{tpu_custom_call.1} parent=1 // pred_check_branch
      %16 = sbr.rel (0) target = $region5
    $region4: #{tpu_custom_call.1} parent=1 // pred_region
      %18 = vsyncadd [#allocation3], 0
      %s19 = sshll.u32 %s0, 4
      %s20 = int_to_ptr.hbm [resolvable:$true] %s19
      %s21 = sshll.u32 [#allocation2], 4
      %s22 = int_to_ptr.vmem [resolvable:$true] %s21
      %27 = dma.hbm_to_vmem [thread:$0]  %s20, 256, %s22, [#allocation3], 128, 128, 8
    $region5: #{tpu_custom_call.1} parent=1 // pred_fallthru
      _
    // Predicated region
    $region6: #{tpu_custom_call.1} parent=1 // pred_check
      _
    $region7: #{tpu_custom_call.1} parent=1 // pred_check_branch
      %29 = sbr.rel (0) target = $region9
    $region8: #{tpu_custom_call.1} parent=1 // pred_region
      %31 = vsyncadd [#allocation6], 0
      %s32 = sshll.u32 %s1, 4
      %s33 = int_to_ptr.hbm [resolvable:$true] %s32
      %s34 = sshll.u32 [#allocation5], 4
      %s35 = int_to_ptr.vmem [resolvable:$true] %s34
      %40 = dma.hbm_to_vmem [thread:$0]  %s33, 768, %s35, [#allocation6], 192, 192, 12
    $region9: #{tpu_custom_call.1} parent=1 // pred_fallthru
      _
    // Predicated region
    $region10: #{tpu_custom_call.1} parent=1 // pred_check
      _
    $region11: #{tpu_custom_call.1} parent=1 // pred_check_branch
      %42 = sbr.rel (0) target = $region13
    $region12: #{tpu_custom_call.1} parent=1 // pred_region
      %44 = vsyncadd [#allocation6], 0
      %s46 = sshll.u32 %s2, 4
      %s47 = int_to_ptr.hbm [resolvable:$true] %s46
      %s48 = sshll.u32 [#allocation7], 4
      %s49 = int_to_ptr.vmem [resolvable:$true] %s48
      %51 = dma.hbm_to_vmem [thread:$0]  %s47, 48, %s49, [#allocation6]
    $region13: #{tpu_custom_call.1} parent=1 // pred_fallthru
      _
    // Predicated region
    $region14: #{tpu_custom_call.1} parent=1 // pred_check
      _
    $region15: #{tpu_custom_call.1} parent=1 // pred_check_branch
      %53 = sbr.rel (0) target = $region17
    $region16: #{tpu_custom_call.1} parent=1 // pred_region
      %55 = dma.done [#allocation3], 256
    $region17: #{tpu_custom_call.1} parent=1 // pred_fallthru
      _
    // Predicated region
    $region18: #{tpu_custom_call.1} parent=1 // pred_check
      _
    $region19: #{tpu_custom_call.1} parent=1 // pred_check_branch
      %57 = sbr.rel (0) target = $region21
    $region20: #{tpu_custom_call.1} parent=1 // pred_region
      %59 = dma.done [#allocation6], 768
    $region21: #{tpu_custom_call.1} parent=1 // pred_fallthru
      _
    // Predicated region
    $region22: #{tpu_custom_call.1} parent=1 // pred_check
      _
    $region23: #{tpu_custom_call.1} parent=1 // pred_check_branch
      %61 = sbr.rel (0) target = $region25
    $region24: #{tpu_custom_call.1} parent=1 // pred_region
      %63 = dma.done [#allocation6], 48
    $region25: #{tpu_custom_call.1} parent=1 // pred_fallthru
      _
    %v65 = vld [vmem:[#allocation2] sm:$0xff]
    %v66 = vld [vmem:[#allocation2 + $0x8] sm:$0xff]
    %v67 = vpack.c.bf16 %v66, %v65
    %v68 = vld [vmem:[#allocation5] sm:$0xff]
    %v69 = vld [vmem:[#allocation5 + $0x8] sm:$0xf]
    %v70 = vld [vmem:[#allocation5 + $0xc] sm:$0xff]
    %v71 = vld [vmem:[#allocation5 + $0x14] sm:$0xf]
    %v72 = vld [vmem:[#allocation5 + $0x18] sm:$0xff]
    %v73 = vld [vmem:[#allocation5 + $0x20] sm:$0xf]
    %v74 = vld [vmem:[#allocation5 + $0x24] sm:$0xff]
    %v75 = vld [vmem:[#allocation5 + $0x2c] sm:$0xf]
    %v76 = vld [vmem:[#allocation7] sm:$0x7]
    %v78 = vperm.slane %v76, 0
    %v79 = vperm.slane %v76, 1
    %v80 = vperm.slane %v76, 2
    %v92 = vunpack.c.l.b16 %v68
    %v93 = vunpack.c.h.b16 %v68
    %v94 = vunpack.c.l.b16 %v69
    %v95 = vunpack.c.l.b16 %v70
    %v96 = vunpack.c.h.b16 %v70
    %v97 = vunpack.c.l.b16 %v71
    %v98 = vunpack.c.l.b16 %v72
    %v99 = vunpack.c.h.b16 %v72
    %v100 = vunpack.c.l.b16 %v73
    %v101 = vunpack.c.l.b16 %v74
    %v102 = vunpack.c.h.b16 %v74
    %v103 = vunpack.c.l.b16 %v75
    %v104 = vpack.c.b16 %v95, %v92
    %v105 = vpack.c.b16 %v96, %v93
    %v106 = vpack.c.b16 %v97, %v94
    %v107 = vpack.c.b16 %v101, %v98
    %v108 = vpack.c.b16 %v102, %v99
    %v109 = vpack.c.b16 %v103, %v100
    %vm116 = vcmask 261120
    %v118 = vsel %vm116, %v67, 0
    %120 = vmatpush.bf16.msra.mxu0 0
    %121 = vmatpush.bf16.msra.mxu0 0
    %122 = vmatpush.bf16.msra.mxu0 0
    %123 = vmatpush.bf16.msra.mxu0 0
    %124 = vmatpush.bf16.msra.mxu0 0
    %125 = vmatpush.bf16.msra.mxu0 0
    %126 = vmatpush.bf16.msra.mxu0 %v107
    %127 = vmatpush.bf16.msra.mxu0 %v104
    %128 = vmatmul.bf16.gmra.mxu0 %v118
    %v129 = vpop.f32.mrf.mxu0
    %v130 = vadd.f32 %v78, %v129
    %v131 = vpop.f32.mrf.mxu0
    %v132 = vadd.f32 %v78, %v131
    %133 = vdwg.mxu0
    %134 = vmatpush.bf16.msra.mxu0 0
    %135 = vmatpush.bf16.msra.mxu0 0
    %136 = vmatpush.bf16.msra.mxu0 0
    %137 = vmatpush.bf16.msra.mxu0 0
    %138 = vmatpush.bf16.msra.mxu0 0
    %139 = vmatpush.bf16.msra.mxu0 0
    %140 = vmatpush.bf16.msra.mxu0 %v108
    %141 = vmatpush.bf16.msra.mxu0 %v105
    %142 = vmatmul.bf16.gmra.mxu0 %v118
    %v143 = vpop.f32.mrf.mxu0
    %v144 = vadd.f32 %v79, %v143
    %v145 = vpop.f32.mrf.mxu0
    %v146 = vadd.f32 %v79, %v145
    %147 = vdwg.mxu0
    %148 = vmatpush.bf16.msra.mxu0 0
    %149 = vmatpush.bf16.msra.mxu0 0
    %150 = vmatpush.bf16.msra.mxu0 0
    %151 = vmatpush.bf16.msra.mxu0 0
    %152 = vmatpush.bf16.msra.mxu0 0
    %153 = vmatpush.bf16.msra.mxu0 0
    %154 = vmatpush.bf16.msra.mxu0 %v109
    %155 = vmatpush.bf16.msra.mxu0 %v106
    %156 = vmatmul.bf16.gmra.mxu0 %v118
    %v157 = vpop.f32.mrf.mxu0
    %v158 = vadd.f32 %v80, %v157
    %v159 = vpop.f32.mrf.mxu0
    %v160 = vadd.f32 %v80, %v159
    %161 = vdwg.mxu0
    %v162 = vpack.c.bf16 %v144, %v130
    %v163 = vpack.c.bf16 %v158, %v158
    %v164 = vpack.c.bf16 %v146, %v132
    %v165 = vpack.c.bf16 %v160, %v160
    %166 = vst [vmem:[#allocation8] sm:$0xf] %v162
    %167 = vst [vmem:[#allocation8 + $0x4] sm:$0xf] %v164
    %v170 = vrot.slane %v162, 4
    %v171 = vrot.slane %v164, 4
    %174 = vst [vmem:[#allocation9] sm:$0xf] %v170
    %175 = vst [vmem:[#allocation9 + $0x4] sm:$0xf] %v171
    %176 = vst [vmem:[#allocation11] sm:$0xf] %v163
    %177 = vst [vmem:[#allocation11 + $0x4] sm:$0xf] %v165
    // Predicated region
    $region26: #{tpu_custom_call.1} parent=1 // pred_check
      _
    $region27: #{tpu_custom_call.1} parent=1 // pred_check_branch
      %179 = sbr.rel (0) target = $region29
    $region28: #{tpu_custom_call.1} parent=1 // pred_region
      %181 = vsyncadd [#allocation4], 0
      %s182 = sshll.u32 [#allocation8], 4
      %s183 = int_to_ptr.vmem [resolvable:$true] %s182
      %s184 = sshll.u32 %s3, 4
      %s185 = int_to_ptr.hbm [resolvable:$true] %s184
      %190 = dma.vmem_to_hbm [thread:$0]  %s183, 128, %s185, [#allocation4], 64, 64, 4
    $region29: #{tpu_custom_call.1} parent=1 // pred_fallthru
      _
    // Predicated region
    $region30: #{tpu_custom_call.1} parent=1 // pred_check
      _
    $region31: #{tpu_custom_call.1} parent=1 // pred_check_branch
      %192 = sbr.rel (0) target = $region33
    $region32: #{tpu_custom_call.1} parent=1 // pred_region
      %194 = vsyncadd [#allocation10], 0
      %s195 = sshll.u32 [#allocation9], 4
      %s196 = int_to_ptr.vmem [resolvable:$true] %s195
      %s197 = sshll.u32 %s4, 4
      %s198 = int_to_ptr.hbm [resolvable:$true] %s197
      %203 = dma.vmem_to_hbm [thread:$0]  %s196, 128, %s198, [#allocation10], 64, 64, 4
    $region33: #{tpu_custom_call.1} parent=1 // pred_fallthru
      _
    // Predicated region
    $region34: #{tpu_custom_call.1} parent=1 // pred_check
      _
    $region35: #{tpu_custom_call.1} parent=1 // pred_check_branch
      %205 = sbr.rel (0) target = $region37
    $region36: #{tpu_custom_call.1} parent=1 // pred_region
      %207 = vsyncadd [#allocation10], 0
      %s208 = sshll.u32 [#allocation11], 4
      %s209 = int_to_ptr.vmem [resolvable:$true] %s208
      %s210 = sshll.u32 %s5, 4
      %s211 = int_to_ptr.hbm [resolvable:$true] %s210
      %216 = dma.vmem_to_hbm [thread:$0]  %s209, 128, %s211, [#allocation10], 64, 64, 4
    $region37: #{tpu_custom_call.1} parent=1 // pred_fallthru
      _
    // Predicated region
    $region38: #{tpu_custom_call.1} parent=1 // pred_check
      _
    $region39: #{tpu_custom_call.1} parent=1 // pred_check_branch
      %218 = sbr.rel (0) target = $region41
    $region40: #{tpu_custom_call.1} parent=1 // pred_region
      %220 = dma.done [#allocation4], 128
    $region41: #{tpu_custom_call.1} parent=1 // pred_fallthru
      _
    // Predicated region
    $region42: #{tpu_custom_call.1} parent=1 // pred_check
      _
    $region43: #{tpu_custom_call.1} parent=1 // pred_check_branch
      %222 = sbr.rel (0) target = $region45
    $region44: #{tpu_custom_call.1} parent=1 // pred_region
      %224 = dma.done [#allocation10], 128
    $region45: #{tpu_custom_call.1} parent=1 // pred_fallthru
      _
    // Predicated region
    $region46: #{tpu_custom_call.1} parent=1 // pred_check
      _
    $region47: #{tpu_custom_call.1} parent=1 // pred_check_branch
      %226 = sbr.rel (0) target = $region49
    $region48: #{tpu_custom_call.1} parent=1 // pred_region
      %228 = dma.done [#allocation10], 128
    $region49: #{tpu_custom_call.1} parent=1 // pred_fallthru
      _
    %229 = vsyncpa [#allocation3], 1
    %230 = vsyncpa [#allocation6], 1
    %231 = vsyncpa [#allocation4], 1
    %232 = vsyncpa [#allocation10], 1

</llo_original>
